<compile_context>
chip_gen: v7x
topology: tpu7x:2x2x1
jax: 0.10.0
libtpu: 0.0.40
codegen_flags: <defaults>
</compile_context>

<pallas_src>
import functools

import jax
import jax.numpy as jnp
from jax.experimental import pallas as pl
from jax.experimental.pallas import tpu as pltpu

_LANES = 128


def _sum3_kernel(a_ref, b_ref, c_ref, d_ref):
    # Two VPU adds per vreg; HBM DMA is the binding resource.
    d_ref[...] = a_ref[...] + b_ref[...] + c_ref[...]


@functools.lru_cache(maxsize=1)
def _chip_info():
    """Returns (physical VMEM bytes, is_v7x). Conservative defaults on failure."""
    vmem_cap = 64 << 20          # v7x-sized default: safe on every generation
    is_v7x = False
    try:
        vmem_cap = int(pltpu.get_tpu_info().vmem_capacity_bytes)
        is_v7x = vmem_cap <= (64 << 20)
    except Exception:
        pass
    try:
        kind = jax.devices()[0].device_kind.lower()
        if ("v7" in kind) or ("7x" in kind):
            is_v7x = True
    except Exception:
        pass
    return vmem_cap, is_v7x


def _sum3_pallas(a, b, c, n, vmem_cap, is_v7x, target_block_bytes):
    dtype = a.dtype
    itemsize = jnp.dtype(dtype).itemsize

    # Kernel handles the 128-aligned prefix; the (<128-element) tail is added
    # in plain JAX and stitched back (far cheaper than padding all 3 inputs).
    n_kernel = (n // _LANES) * _LANES
    tail = n - n_kernel

    a_flat, b_flat, c_flat = a.reshape(-1), b.reshape(-1), c.reshape(-1)
    if tail:
        a_main, b_main, c_main = (a_flat[:n_kernel], b_flat[:n_kernel],
                                  c_flat[:n_kernel])
    else:
        a_main, b_main, c_main = a_flat, b_flat, c_flat

    # Lane-dense slab; widen the row up to 1024 elements when possible so
    # stores are wide unmasked vst and per-row address generation is amortized.
    width = _LANES
    for w in (1024, 512, 256):
        if n_kernel % w == 0:
            width = w
            break
    rows = n_kernel // width

    # Block sizing (per-chip target, dtype-aware sublane rounding).
    if target_block_bytes is None:
        target_block_bytes = (4 << 20) if vmem_cap <= (64 << 20) else (8 << 20)
    sub_mult = max(8, 32 // itemsize)       # 8 rows f32, 16 bf16, 32 int8/fp8
    min_steps = 4 if is_v7x else 2          # dual-TC v7x vs single-TC v5e/v6e
    target_rows = max(sub_mult, target_block_bytes // (width * itemsize))
    block_rows = min(target_rows, pl.cdiv(rows, min_steps))
    block_rows = max(sub_mult, (block_rows // sub_mult) * sub_mult)
    block_rows = min(block_rows, rows)
    num_steps = pl.cdiv(rows, block_rows)   # trailing partial block is masked

    # VMEM budget: 4 streams x 2 pipeline buffers x block + headroom, capped
    # safely under this chip's physical VMEM.
    block_bytes = block_rows * width * itemsize
    vmem_limit = min(int(vmem_cap * 0.9),
                     max(32 << 20, 4 * 2 * block_bytes + (8 << 20)))

    # Engage both v7x TensorCores explicitly; plain PARALLEL elsewhere.
    semantics_choices = []
    if is_v7x and num_steps >= 2:
        semantics_choices.append(pltpu.CORE_PARALLEL)
    semantics_choices.append(pltpu.PARALLEL)

    spec = pl.BlockSpec((block_rows, width), lambda i: (i, 0))
    cost = pl.CostEstimate(flops=2 * n_kernel, transcendentals=0,
                           bytes_accessed=4 * n_kernel * itemsize)

    def run(sem):
        return pl.pallas_call(
            _sum3_kernel,
            out_shape=jax.ShapeDtypeStruct((rows, width), dtype),
            grid_spec=pltpu.PrefetchScalarGridSpec(
                num_scalar_prefetch=0,
                grid=(num_steps,),
                in_specs=[spec, spec, spec],
                out_specs=spec,
            ),
            compiler_params=pltpu.CompilerParams(
                dimension_semantics=(sem,),
                vmem_limit_bytes=vmem_limit,
            ),
            cost_estimate=cost,
        )(a_main.reshape(rows, width),
          b_main.reshape(rows, width),
          c_main.reshape(rows, width))

    d_main, last_err = None, None
    for sem in semantics_choices:
        try:
            d_main = run(sem)
            break
        except Exception as e:  # CORE_PARALLEL safety net -> plain PARALLEL
            last_err = e
    if d_main is None:
        raise last_err

    d_flat = d_main.reshape(-1)
    if tail:
        d_tail = a_flat[n_kernel:] + b_flat[n_kernel:] + c_flat[n_kernel:]
        d_flat = jnp.concatenate([d_flat, d_tail])
    return d_flat


def sum_net_forward(a, b, c, *,
                    target_block_bytes=None,
                    min_pallas_elements=1 << 20,
                    force_kernel=False,
                    verbose=False):
    """d = a + b + c (SumNet.forward), computed in a Pallas TPU kernel."""
    assert a.shape == b.shape == c.shape
    assert a.dtype == b.dtype == c.dtype
    orig_shape = a.shape
    n = a.size

    vmem_cap, is_v7x = _chip_info()

    # Small-size fallback: below ~1M elements (or <1 lane row) the fused XLA
    # add is strictly faster than paying pallas_call launch + DMA setup cost.
    if (n < min_pallas_elements and not force_kernel) or n < _LANES:
        d = a + b + c
    else:
        d = _sum3_pallas(a, b, c, n, vmem_cap, is_v7x,
                         target_block_bytes).reshape(orig_shape)

    if verbose:
        # Mirrors the PyTorch module's host-side logging (off by default so the
        # script's stdout stays clean).
        print('forward():')
        print('    a:', a)
        print('    b:', b)
        print('    c:', c)
        print()
        print('    d:', d)
        print()
    return d


if __name__ == "__main__":
    key = jax.random.PRNGKey(0)
    ka, kb, kc = jax.random.split(key, 3)

    # SumNet has no parameters; it just sums three tensors (NCHW-style shape).
    shape = (2, 4, 16, 16)
    a = jax.random.normal(ka, shape, dtype=jnp.float32)
    b = jax.random.normal(kb, shape, dtype=jnp.float32)
    c = jax.random.normal(kc, shape, dtype=jnp.float32)
    ref = a + b + c

    # Force the Pallas path so the kernel actually runs at this small size.
    d = jax.block_until_ready(sum_net_forward(a, b, c, force_kernel=True))
    assert d.shape == shape and d.dtype == jnp.float32
    assert jnp.allclose(d, ref, atol=1e-6, rtol=1e-6)

    # Ragged (non-128-multiple) size: kernel on the aligned prefix + JAX tail.
    rshape = (3, 5, 7, 11)  # 1155 elements -> 1152 in-kernel, 3-element tail
    ar = jax.random.normal(ka, rshape, dtype=jnp.float32)
    br = jax.random.normal(kb, rshape, dtype=jnp.float32)
    cr = jax.random.normal(kc, rshape, dtype=jnp.float32)
    dr = jax.block_until_ready(sum_net_forward(ar, br, cr, force_kernel=True))
    assert jnp.allclose(dr, ar + br + cr, atol=1e-6, rtol=1e-6)

    # Packed dtype (bf16) path exercising the dtype-aware sublane rounding.
    hshape = (4, 8, 16, 16)
    ah = jax.random.normal(ka, hshape, dtype=jnp.bfloat16)
    bh = jax.random.normal(kb, hshape, dtype=jnp.bfloat16)
    ch = jax.random.normal(kc, hshape, dtype=jnp.bfloat16)
    dh = jax.block_until_ready(sum_net_forward(ah, bh, ch, force_kernel=True))
    assert jnp.allclose(dh.astype(jnp.float32),
                        (ah + bh + ch).astype(jnp.float32),
                        atol=1e-2, rtol=1e-2)

    # Auto path (small inputs take the plain-JAX fused-add fallback).
    d_auto = jax.block_until_ready(sum_net_forward(a, b, c))
    assert jnp.allclose(d_auto, ref, atol=1e-6, rtol=1e-6)

    # TODO(synk): the PyTorch forward also print()s its inputs/outputs; that
    # host-side logging is available via sum_net_forward(..., verbose=True) and
    # is intentionally not part of the kernel compute.
    print("KERNEL_OK")
</pallas_src>

<mosaic_0001>
module attributes {stable_mosaic.version = 11 : i64} {
  func.func @_sum3_kernel(%arg0: i32, %arg1: memref<2x1024xf32, #tpu.memory_space<vmem>>, %arg2: memref<2x1024xf32, #tpu.memory_space<vmem>>, %arg3: memref<2x1024xf32, #tpu.memory_space<vmem>>, %arg4: memref<2x1024xf32, #tpu.memory_space<vmem>>) attributes {dimension_semantics = [#tpu.dimension_semantics<parallel>], iteration_bounds = array<i64: 1>, scalar_prefetch = 0 : i64, scratch_operands = 0 : i64, tpu.core_type = #tpu.core_type<tc>, window_params = [{transform_indices = @transform_0, window_bounds = array<i64: 2, 1024>}, {transform_indices = @transform_1, window_bounds = array<i64: 2, 1024>}, {transform_indices = @transform_2, window_bounds = array<i64: 2, 1024>}, {transform_indices = @transform_3, window_bounds = array<i64: 2, 1024>}]} {
    %c0 = arith.constant 0 : index
    %c0_0 = arith.constant 0 : index
    %0 = vector.load %arg1[%c0, %c0_0] : memref<2x1024xf32, #tpu.memory_space<vmem>>, vector<2x1024xf32>
    %c0_1 = arith.constant 0 : index
    %c0_2 = arith.constant 0 : index
    %1 = vector.load %arg2[%c0_1, %c0_2] : memref<2x1024xf32, #tpu.memory_space<vmem>>, vector<2x1024xf32>
    %2 = arith.addf %0, %1 : vector<2x1024xf32>
    %c0_3 = arith.constant 0 : index
    %c0_4 = arith.constant 0 : index
    %3 = vector.load %arg3[%c0_3, %c0_4] : memref<2x1024xf32, #tpu.memory_space<vmem>>, vector<2x1024xf32>
    %4 = arith.addf %2, %3 : vector<2x1024xf32>
    %c0_5 = arith.constant 0 : index
    %c0_6 = arith.constant 0 : index
    %5 = vector.load %arg4[%c0_5, %c0_6] : memref<2x1024xf32, #tpu.memory_space<vmem>>, vector<2x1024xf32>
    tpu.vector_store %arg4[%c0_5, %c0_6], %4 {strides = array<i32>} : memref<2x1024xf32, #tpu.memory_space<vmem>>, vector<2x1024xf32>,
    return
  }
  func.func @transform_0(%arg0: i32) -> (i32, i32) {
    %c0_i32 = arith.constant 0 : i32
    %c0_i32_0 = arith.constant 0 : i32
    return %arg0, %c0_i32 : i32, i32
  }
  func.func @transform_1(%arg0: i32) -> (i32, i32) {
    %c0_i32 = arith.constant 0 : i32
    %c0_i32_0 = arith.constant 0 : i32
    return %arg0, %c0_i32 : i32, i32
  }
  func.func @transform_2(%arg0: i32) -> (i32, i32) {
    %c0_i32 = arith.constant 0 : i32
    %c0_i32_0 = arith.constant 0 : i32
    return %arg0, %c0_i32 : i32, i32
  }
  func.func @transform_3(%arg0: i32) -> (i32, i32) {
    %c0_i32 = arith.constant 0 : i32
    %c0_i32_0 = arith.constant 0 : i32
    return %arg0, %c0_i32 : i32, i32
  }
}

</mosaic_0001>

<llo_original>
// kernel: tpu_custom_call.1
$region0: #{tpu_custom_call.1}
  #allocation0 [shape = 'u32[]', space=smem, size = 0x4, offset = 0x4, fixed_abs, tag = 'smem constant byte address 0x4 - core index']
  #allocation1 [shape = 'u32[144,128]{1,0:T(1,128)}', space=vmem, size = 0x12000, scoped, tag = 'internal scratch']
  %s0 = inlined_call_operand.hbm [shape: f32[2,1024], index: 0, kind: input, shape index: {}]
  %s1 = inlined_call_operand.hbm [shape: f32[2,1024], index: 1, kind: input, shape index: {}]
  %s2 = inlined_call_operand.hbm [shape: f32[2,1024], index: 2, kind: input, shape index: {}]
  %s3 = inlined_call_operand.hbm [shape: f32[2,1024], index: 3, kind: output, shape index: {}]
  %s4 = sld [smem:[#allocation0]]
  $region34: #{tpu_custom_call.1} parent=0
    _
  %s6 = ssub.s32 1, %s4
  %s7 = scalar_select 0, %s6, %s4
  $region1: #{tpu_custom_call.1} parent=0
    #allocation2 [shape = 'u8[8192]{0}', space=vmem, size = 0x2000, scoped, tag = 'input window, operand 0, single buffered']
    #allocation3 [shape = 's32[1]{0}', space=sflag, size = 0x4, scoped, tag = 'scoped memory for tpu_custom_call.1']
    #allocation4 [shape = 's32[1]{0}', space=sflag, size = 0x4, scoped, tag = 'scoped memory for tpu_custom_call.1']
    #allocation5 [shape = 'u8[8192]{0}', space=vmem, size = 0x2000, scoped, tag = 'input window, operand 1, single buffered']
    #allocation6 [shape = 's32[1]{0}', space=sflag, size = 0x4, scoped, tag = 'scoped memory for tpu_custom_call.1']
    #allocation7 [shape = 'u8[8192]{0}', space=vmem, size = 0x2000, scoped, tag = 'input window, operand 2, single buffered']
    #allocation8 [shape = 'u8[8192]{0}', space=vmem, size = 0x2000, scoped, tag = 'output window, operand 0, single buffered']
    %8 = vsyncpa [#allocation3], 0
    %9 = vsyncpa [#allocation6], 0
    %10 = vsyncpa [#allocation4], 0
    // Predicated region
    $region2: #{tpu_custom_call.1} parent=1 // pred_check
      _
    $region3: #{tpu_custom_call.1} parent=1 // pred_check_branch
      %12 = sbr.rel (0) target = $region5
    $region4: #{tpu_custom_call.1} parent=1 // pred_region
      %s14 = ssub.s32 256, 256
      %15 = vsyncadd [#allocation3], %s14
      %s17 = sshll.u32 [#allocation2], 4
      %s18 = int_to_ptr.vmem [resolvable:$true] %s17
      %20 = dma.hbm_to_vmem [thread:$0]  %s0, 256, %s18, [#allocation3]
    $region5: #{tpu_custom_call.1} parent=1 // pred_fallthru
      _
    // Predicated region
    $region6: #{tpu_custom_call.1} parent=1 // pred_check
      _
    $region7: #{tpu_custom_call.1} parent=1 // pred_check_branch
      %22 = sbr.rel (0) target = $region9
    $region8: #{tpu_custom_call.1} parent=1 // pred_region
      %s24 = ssub.s32 256, 256
      %25 = vsyncadd [#allocation6], %s24
      %s27 = sshll.u32 [#allocation5], 4
      %s28 = int_to_ptr.vmem [resolvable:$true] %s27
      %30 = dma.hbm_to_vmem [thread:$0]  %s1, 256, %s28, [#allocation6]
    $region9: #{tpu_custom_call.1} parent=1 // pred_fallthru
      _
    // Predicated region
    $region10: #{tpu_custom_call.1} parent=1 // pred_check
      _
    $region11: #{tpu_custom_call.1} parent=1 // pred_check_branch
      %32 = sbr.rel (0) target = $region13
    $region12: #{tpu_custom_call.1} parent=1 // pred_region
      %s34 = ssub.s32 256, 256
      %35 = vsyncadd [#allocation6], %s34
      %s37 = sshll.u32 [#allocation7], 4
      %s38 = int_to_ptr.vmem [resolvable:$true] %s37
      %40 = dma.hbm_to_vmem [thread:$0]  %s2, 256, %s38, [#allocation6]
    $region13: #{tpu_custom_call.1} parent=1 // pred_fallthru
      _
    // Predicated region
    $region14: #{tpu_custom_call.1} parent=1 // pred_check
      _
    $region15: #{tpu_custom_call.1} parent=1 // pred_check_branch
      %42 = sbr.rel (0) target = $region17
    $region16: #{tpu_custom_call.1} parent=1 // pred_region
      %43 = dma.done [#allocation3], 256
    $region17: #{tpu_custom_call.1} parent=1 // pred_fallthru
      _
    // Predicated region
    $region18: #{tpu_custom_call.1} parent=1 // pred_check
      _
    $region19: #{tpu_custom_call.1} parent=1 // pred_check_branch
      %45 = sbr.rel (0) target = $region21
    $region20: #{tpu_custom_call.1} parent=1 // pred_region
      %46 = dma.done [#allocation6], 256
    $region21: #{tpu_custom_call.1} parent=1 // pred_fallthru
      _
    // Predicated region
    $region22: #{tpu_custom_call.1} parent=1 // pred_check
      _
    $region23: #{tpu_custom_call.1} parent=1 // pred_check_branch
      %48 = sbr.rel (0) target = $region25
    $region24: #{tpu_custom_call.1} parent=1 // pred_region
      %49 = dma.done [#allocation6], 256
    $region25: #{tpu_custom_call.1} parent=1 // pred_fallthru
      _
    %v50 = vld [vmem:[#allocation2] sm:$0xff]
    %v51 = vld [vmem:[#allocation2 + $0x8] sm:$0xff]
    %v52 = vld [vmem:[#allocation5] sm:$0xff]
    %v53 = vld [vmem:[#allocation5 + $0x8] sm:$0xff]
    %v54 = vadd.f32 %v50, %v52
    %v55 = vadd.f32 %v51, %v53
    %v56 = vld [vmem:[#allocation7] sm:$0xff]
    %v57 = vld [vmem:[#allocation7 + $0x8] sm:$0xff]
    %v58 = vadd.f32 %v54, %v56
    %v59 = vadd.f32 %v55, %v57
    %60 = vst [vmem:[#allocation8] sm:$0xff] %v58
    %61 = vst [vmem:[#allocation8 + $0x8] sm:$0xff] %v59
    // Predicated region
    $region26: #{tpu_custom_call.1} parent=1 // pred_check
      _
    $region27: #{tpu_custom_call.1} parent=1 // pred_check_branch
      %63 = sbr.rel (0) target = $region29
    $region28: #{tpu_custom_call.1} parent=1 // pred_region
      %s65 = ssub.s32 256, 256
      %66 = vsyncadd [#allocation4], %s65
      %s68 = sshll.u32 [#allocation8], 4
      %s69 = int_to_ptr.vmem [resolvable:$true] %s68
      %71 = dma.vmem_to_hbm [thread:$0]  %s69, 256, %s3, [#allocation4]
    $region29: #{tpu_custom_call.1} parent=1 // pred_fallthru
      _
    // Predicated region
    $region30: #{tpu_custom_call.1} parent=1 // pred_check
      _
    $region31: #{tpu_custom_call.1} parent=1 // pred_check_branch
      %73 = sbr.rel (0) target = $region33
    $region32: #{tpu_custom_call.1} parent=1 // pred_region
      %74 = dma.done [#allocation4], 256
    $region33: #{tpu_custom_call.1} parent=1 // pred_fallthru
      _
    %75 = vsyncpa [#allocation3], 1
    %76 = vsyncpa [#allocation6], 1
    %77 = vsyncpa [#allocation4], 1

</llo_original>
